<compile_context>
chip_gen: v6e
topology: v6e:2x2x1
jax: 0.10.0
libtpu: 0.0.40
codegen_flags: <defaults>
</compile_context>

<pallas_src>
import jax
import jax.numpy as jnp
from jax.experimental import pallas as pl
from jax.experimental.pallas import tpu as pltpu


def _make_encoder_kernel(d_hid, d_enc, write_activations):
    def kernel(xt_ref, w1_ref, w2_ref, pp_ref, out_ref):
        # Feature-major tiles: xt (d_in, TB); batch on the 128-wide lane axis.
        xt = xt_ref[...]

        # Packed small params (f32): columns = [b1 | b2 | wc | bc],
        # broadcast over the lane (batch) axis.
        b1 = pp_ref[0:d_hid, 0:1]            # (d_hid, 1)
        b2 = pp_ref[0:d_enc, 1:2]            # (d_enc, 1)
        wc = pp_ref[0:d_enc, 2:3]            # (d_enc, 1)
        bc = pp_ref[0:d_enc, 3:4]            # (d_enc, 1)

        # Layer 0: Linear(d_in -> d_hid) + tanh, f32 accumulation on the MXU.
        # TODO(synk): training-mode dropout (p=0.2) not implemented; eval semantics.
        a1_f32 = jnp.tanh(
            jnp.dot(w1_ref[...], xt, preferred_element_type=jnp.float32) + b1)
        a1 = a1_f32.astype(xt.dtype)         # narrow for the second MXU pass

        # Last linear: Linear(d_hid -> d_enc) + tanh -> H.
        h_f32 = jnp.tanh(
            jnp.dot(w2_ref[...], a1, preferred_element_type=jnp.float32) + b2)

        # HiddenElementsFinalLayer (map_element_size=1): per-element scale+bias, tanh.
        y_f32 = jnp.tanh(h_f32 * wc + bc)

        if write_activations:
            # One packed slab: rows [0:d_hid) = a1, [d_hid:d_hid+d_enc) = H,
            # [d_hid+d_enc:d_hid+2*d_enc) = y_hat.
            out_ref[0:d_hid, :] = a1.astype(out_ref.dtype)
            out_ref[d_hid:d_hid + d_enc, :] = h_f32.astype(out_ref.dtype)
            out_ref[d_hid + d_enc:d_hid + 2 * d_enc, :] = y_f32.astype(out_ref.dtype)
        else:
            out_ref[...] = y_f32.astype(out_ref.dtype)

    return kernel


def _pick_batch_tile(B, block_batch):
    """Lane-aligned (128-multiple) batch tile; >=2 grid steps when B > 128."""
    if B <= 128:
        return B                              # full-dim block (lane rule satisfied)
    half = ((B // 2 + 127) // 128) * 128      # ~B/2 rounded up to 128
    return max(128, min(block_batch, half))


def encoder_forward(x, params, *, block_batch=2048, out_dtype=jnp.bfloat16,
                    compute_dtype=jnp.bfloat16, return_activations=True,
                    feature_major_outputs=False):
    """Fused encoder forward. Returns (y_hat, x, H, [a1, H]) like PyTorch.

    Weights are stored PyTorch-style: W [out, in], biases/scales 1-D [out].
    compute_dtype/out_dtype = jnp.float32 gives near-exact f32 parity (at 2x
    the HBM traffic).  feature_major_outputs=True returns [features, batch]
    arrays with zero wrapper transposes.  return_activations=False writes and
    returns only y_hat (a1/H omitted).
    """
    w1, b1, w2, b2, wc, bc = params
    B, d_in = x.shape
    d_hid = w1.shape[0]
    d_enc = w2.shape[0]
    max_d = max(d_hid, d_enc)

    w1c = w1.astype(compute_dtype)
    w2c = w2.astype(compute_dtype)

    # Pack the four tiny parameter vectors into one VMEM-resident f32 block.
    pp = jnp.zeros((max_d, 4), jnp.float32)
    pp = pp.at[:d_hid, 0].set(b1.astype(jnp.float32))
    pp = pp.at[:d_enc, 1].set(b2.astype(jnp.float32))
    pp = pp.at[:d_enc, 2].set(wc.astype(jnp.float32))
    pp = pp.at[:d_enc, 3].set(bc.astype(jnp.float32))

    # Feature-major (lane-dense) input slab: [d_in, B], batch on the lane axis.
    # Cast to the narrower compute dtype first so the transpose moves fewer bytes.
    xt = x.astype(compute_dtype).T

    assert block_batch % 128 == 0, "block_batch must be a multiple of 128"
    tb = _pick_batch_tile(B, block_batch)
    grid = (pl.cdiv(B, tb),)

    n_rows = (d_hid + 2 * d_enc) if return_activations else d_enc

    cbytes = jnp.dtype(compute_dtype).itemsize
    obytes = jnp.dtype(out_dtype).itemsize
    cost = pl.CostEstimate(
        flops=int(2 * B * (d_in * d_hid + d_hid * d_enc) + 2 * B * d_enc),
        transcendentals=int(B * (d_hid + 2 * d_enc)),
        bytes_accessed=int(B * d_in * cbytes + B * n_rows * obytes
                           + (w1.size + w2.size) * cbytes + pp.size * 4),
    )

    # Only raise the scoped-VMEM limit if the double-buffered tiles actually
    # approach v5e's 16 MiB default (they don't at normal block_batch).
    vmem_need = (2 * tb * (d_in * cbytes + n_rows * obytes)
                 + (w1.size + w2.size) * cbytes + pp.size * 4)
    vmem_limit = (int(min(2 * vmem_need + (4 << 20), 100 << 20))
                  if vmem_need > (12 << 20) else None)

    kernel = _make_encoder_kernel(d_hid, d_enc, return_activations)

    slab = pl.pallas_call(
        kernel,
        out_shape=jax.ShapeDtypeStruct((n_rows, B), out_dtype),
        grid=grid,
        in_specs=[
            pl.BlockSpec((d_in, tb), lambda i: (0, i)),      # x tile (streamed)
            pl.BlockSpec((d_hid, d_in), lambda i: (0, 0)),   # W1 (VMEM resident)
            pl.BlockSpec((d_enc, d_hid), lambda i: (0, 0)),  # W2 (VMEM resident)
            pl.BlockSpec((max_d, 4), lambda i: (0, 0)),      # packed b1/b2/wc/bc
        ],
        out_specs=pl.BlockSpec((n_rows, tb), lambda i: (0, i)),
        compiler_params=pltpu.CompilerParams(
            dimension_semantics=("parallel",),
            vmem_limit_bytes=vmem_limit),
        cost_estimate=cost,
    )(xt, w1c, w2c, pp)

    if return_activations:
        if feature_major_outputs:
            a1 = slab[0:d_hid]
            H = slab[d_hid:d_hid + d_enc]
            y_hat = slab[d_hid + d_enc:]
        else:
            # Single transpose of the packed slab (layout plumbing back to the
            # PyTorch [batch, features] interface), then cheap column slices.
            slab_t = slab.T
            a1 = slab_t[:, 0:d_hid]
            H = slab_t[:, d_hid:d_hid + d_enc]
            y_hat = slab_t[:, d_hid + d_enc:]
        return y_hat, x, H, [a1, H]
    else:
        y_hat = slab if feature_major_outputs else slab.T
        return y_hat, x, None, []


def init_params(key, x_dim_in, map_dim=20, enc_dim=10):
    """Deterministic synthetic params, PyTorch nn.Linear-style shapes/bounds."""
    k1, k2, k3, k4, k5, k6 = jax.random.split(key, 6)
    s1 = 1.0 / (x_dim_in ** 0.5)
    s2 = 1.0 / (map_dim ** 0.5)
    # Linear(X_dim_in, 20): weight [out, in], bias [out]
    w1 = jax.random.uniform(k1, (map_dim, x_dim_in), jnp.float32, -s1, s1)
    b1 = jax.random.uniform(k2, (map_dim,), jnp.float32, -s1, s1)
    # Linear(20, 10)
    w2 = jax.random.uniform(k3, (enc_dim, map_dim), jnp.float32, -s2, s2)
    b2 = jax.random.uniform(k4, (enc_dim,), jnp.float32, -s2, s2)
    # HiddenElementsFinalLayer: enc_dim independent Linear(1, 1) layers
    # -> per-element scale wc and bias bc (bound 1/sqrt(1) = 1)
    wc = jax.random.uniform(k5, (enc_dim,), jnp.float32, -1.0, 1.0)
    bc = jax.random.uniform(k6, (enc_dim,), jnp.float32, -1.0, 1.0)
    return w1, b1, w2, b2, wc, bc


if __name__ == "__main__":
    key = jax.random.PRNGKey(0)
    k_x, k_p = jax.random.split(key)

    B, X_DIM, MAP_DIM, ENC_DIM = 384, 16, 20, 10
    x = jax.random.normal(k_x, (B, X_DIM), dtype=jnp.float32)
    params = init_params(k_p, X_DIM, map_dim=MAP_DIM, enc_dim=ENC_DIM)

    # Default path (B=384 -> tb=256, 2-step "parallel" grid).
    y_hat, x_out, H, acts = encoder_forward(x, params)
    jax.block_until_ready((y_hat, x_out, H, acts))

    # Shape checks (PyTorch interface: [batch, features]).
    assert y_hat.shape == (B, ENC_DIM)
    assert x_out.shape == (B, X_DIM)
    assert H.shape == (B, ENC_DIM)
    assert acts[0].shape == (B, MAP_DIM) and acts[1].shape == (B, ENC_DIM)

    # Numerical check vs. pure-JAX f32 reference (tolerance covers bf16
    # streaming + bf16 writeback).
    w1, b1, w2, b2, wc, bc = params
    ref_a1 = jnp.tanh(x @ w1.T + b1)
    ref_H = jnp.tanh(ref_a1 @ w2.T + b2)
    ref_y = jnp.tanh(ref_H * wc + bc)
    assert jnp.allclose(acts[0].astype(jnp.float32), ref_a1, atol=3e-2, rtol=3e-2)
    assert jnp.allclose(H.astype(jnp.float32), ref_H, atol=3e-2, rtol=3e-2)
    assert jnp.allclose(y_hat.astype(jnp.float32), ref_y, atol=3e-2, rtol=3e-2)

    # Inference-only path: y_hat alone (drops the a1/H output streams).
    y_only, _, _, _ = encoder_forward(x, params, return_activations=False)
    jax.block_until_ready(y_only)
    assert y_only.shape == (B, ENC_DIM)
    assert jnp.allclose(y_only.astype(jnp.float32), ref_y, atol=3e-2, rtol=3e-2)

    print("KERNEL_OK")
</pallas_src>

<mosaic_0001>
module attributes {stable_mosaic.version = 11 : i64} {
  func.func @kernel(%arg0: i32, %arg1: memref<16x256xbf16, #tpu.memory_space<vmem>>, %arg2: memref<20x16xbf16, #tpu.memory_space<vmem>>, %arg3: memref<10x20xbf16, #tpu.memory_space<vmem>>, %arg4: memref<20x4xf32, #tpu.memory_space<vmem>>, %arg5: memref<40x256xbf16, #tpu.memory_space<vmem>>) attributes {dimension_semantics = [#tpu.dimension_semantics<parallel>], iteration_bounds = array<i64: 2>, scalar_prefetch = 0 : i64, scratch_operands = 0 : i64, tpu.core_type = #tpu.core_type<tc>, window_params = [{transform_indices = @transform_0, window_bounds = array<i64: 16, 256>}, {pipeline_mode = #tpu.pipeline_mode<synchronous>, transform_indices = @transform_1, window_bounds = array<i64: 20, 16>}, {pipeline_mode = #tpu.pipeline_mode<synchronous>, transform_indices = @transform_2, window_bounds = array<i64: 10, 20>}, {pipeline_mode = #tpu.pipeline_mode<synchronous>, transform_indices = @transform_3, window_bounds = array<i64: 20, 4>}, {transform_indices = @transform_4, window_bounds = array<i64: 40, 256>}]} {
    %c0 = arith.constant 0 : index
    %c0_0 = arith.constant 0 : index
    %0 = vector.load %arg1[%c0, %c0_0] : memref<16x256xbf16, #tpu.memory_space<vmem>>, vector<16x256xbf16>
    %c0_1 = arith.constant 0 : index
    %c0_2 = arith.constant 0 : index
    %1 = vector.load %arg4[%c0_1, %c0_2] : memref<20x4xf32, #tpu.memory_space<vmem>>, vector<20x1xf32>
    %c0_3 = arith.constant 0 : index
    %c1 = arith.constant 1 : index
    %2 = vector.load %arg4[%c0_3, %c1] : memref<20x4xf32, #tpu.memory_space<vmem>>, vector<10x1xf32>
    %c0_4 = arith.constant 0 : index
    %c2 = arith.constant 2 : index
    %3 = vector.load %arg4[%c0_4, %c2] : memref<20x4xf32, #tpu.memory_space<vmem>>, vector<10x1xf32>
    %c0_5 = arith.constant 0 : index
    %c3 = arith.constant 3 : index
    %4 = vector.load %arg4[%c0_5, %c3] : memref<20x4xf32, #tpu.memory_space<vmem>>, vector<10x1xf32>
    %c0_6 = arith.constant 0 : index
    %c0_7 = arith.constant 0 : index
    %5 = vector.load %arg2[%c0_6, %c0_7] : memref<20x16xbf16, #tpu.memory_space<vmem>>, vector<20x16xbf16>
    %cst = arith.constant dense<0.000000e+00> : vector<20x256xf32>
    %6 = tpu.matmul %5, %0, %cst {dimension_numbers = #tpu.dot_dimension_numbers<[1], [0], [0], [1], [0, 0, 1, 1], [], []>} : vector<20x16xbf16>, vector<16x256xbf16>, vector<20x256xf32> -> vector<20x256xf32>
    %7 = vector.broadcast %1 : vector<20x1xf32> to vector<20x256xf32>
    %8 = arith.addf %6, %7 : vector<20x256xf32>
    %9 = math.tanh %8 : vector<20x256xf32>
    %10 = arith.truncf %9 : vector<20x256xf32> to vector<20x256xbf16>
    %c0_8 = arith.constant 0 : index
    %c0_9 = arith.constant 0 : index
    %11 = vector.load %arg3[%c0_8, %c0_9] : memref<10x20xbf16, #tpu.memory_space<vmem>>, vector<10x20xbf16>
    %cst_10 = arith.constant dense<0.000000e+00> : vector<10x256xf32>
    %12 = tpu.matmul %11, %10, %cst_10 {dimension_numbers = #tpu.dot_dimension_numbers<[1], [0], [0], [1], [0, 0, 1, 1], [], []>} : vector<10x20xbf16>, vector<20x256xbf16>, vector<10x256xf32> -> vector<10x256xf32>
    %13 = vector.broadcast %2 : vector<10x1xf32> to vector<10x256xf32>
    %14 = arith.addf %12, %13 : vector<10x256xf32>
    %15 = math.tanh %14 : vector<10x256xf32>
    %16 = vector.broadcast %3 : vector<10x1xf32> to vector<10x256xf32>
    %17 = arith.mulf %15, %16 : vector<10x256xf32>
    %18 = vector.broadcast %4 : vector<10x1xf32> to vector<10x256xf32>
    %19 = arith.addf %17, %18 : vector<10x256xf32>
    %20 = math.tanh %19 : vector<10x256xf32>
    %c0_11 = arith.constant 0 : index
    %c0_12 = arith.constant 0 : index
    %21 = vector.load %arg5[%c0_11, %c0_12] : memref<40x256xbf16, #tpu.memory_space<vmem>>, vector<20x256xbf16>
    tpu.vector_store %arg5[%c0_11, %c0_12], %10 {strides = array<i32>} : memref<40x256xbf16, #tpu.memory_space<vmem>>, vector<20x256xbf16>,
    %22 = arith.truncf %15 : vector<10x256xf32> to vector<10x256xbf16>
    %c20 = arith.constant 20 : index
    %c0_13 = arith.constant 0 : index
    %23 = vector.load %arg5[%c20, %c0_13] : memref<40x256xbf16, #tpu.memory_space<vmem>>, vector<10x256xbf16>
    tpu.vector_store %arg5[%c20, %c0_13], %22 {strides = array<i32>} : memref<40x256xbf16, #tpu.memory_space<vmem>>, vector<10x256xbf16>,
    %24 = arith.truncf %20 : vector<10x256xf32> to vector<10x256xbf16>
    %c30 = arith.constant 30 : index
    %c0_14 = arith.constant 0 : index
    %25 = vector.load %arg5[%c30, %c0_14] : memref<40x256xbf16, #tpu.memory_space<vmem>>, vector<10x256xbf16>
    tpu.vector_store %arg5[%c30, %c0_14], %24 {strides = array<i32>} : memref<40x256xbf16, #tpu.memory_space<vmem>>, vector<10x256xbf16>,
    return
  }
  func.func @transform_0(%arg0: i32) -> (i32, i32) {
    %c0_i32 = arith.constant 0 : i32
    %c0_i32_0 = arith.constant 0 : i32
    return %c0_i32, %arg0 : i32, i32
  }
  func.func @transform_1(%arg0: i32) -> (i32, i32) {
    %c0_i32 = arith.constant 0 : i32
    %c0_i32_0 = arith.constant 0 : i32
    %c0_i32_1 = arith.constant 0 : i32
    return %c0_i32, %c0_i32_0 : i32, i32
  }
  func.func @transform_2(%arg0: i32) -> (i32, i32) {
    %c0_i32 = arith.constant 0 : i32
    %c0_i32_0 = arith.constant 0 : i32
    %c0_i32_1 = arith.constant 0 : i32
    return %c0_i32, %c0_i32_0 : i32, i32
  }
  func.func @transform_3(%arg0: i32) -> (i32, i32) {
    %c0_i32 = arith.constant 0 : i32
    %c0_i32_0 = arith.constant 0 : i32
    %c0_i32_1 = arith.constant 0 : i32
    return %c0_i32, %c0_i32_0 : i32, i32
  }
  func.func @transform_4(%arg0: i32) -> (i32, i32) {
    %c0_i32 = arith.constant 0 : i32
    %c0_i32_0 = arith.constant 0 : i32
    return %c0_i32, %arg0 : i32, i32
  }
}

</mosaic_0001>

<llo_original>
// kernel: tpu_custom_call.1
$region0: #{tpu_custom_call.1}
  #allocation0 [shape = 'u32[]', space=smem, size = 0x4, offset = 0x4, fixed_abs, tag = 'smem constant byte address 0x4 - core index']
  #allocation1 [shape = 'u32[144,128]{1,0:T(1,128)}', space=vmem, size = 0x12000, scoped, tag = 'internal scratch']
  %s0 = inlined_call_operand.vmem [shape: bf16[16,384], index: 0, kind: input, shape index: {}]
  %s1 = inlined_call_operand.vmem [shape: bf16[20,16], index: 1, kind: input, shape index: {}]
  %s2 = inlined_call_operand.vmem [shape: bf16[10,20], index: 2, kind: input, shape index: {}]
  %s3 = inlined_call_operand.vmem [shape: f32[20,4], index: 3, kind: input, shape index: {}]
  %s4 = inlined_call_operand.hbm [shape: bf16[40,384], index: 4, kind: output, shape index: {}]
  %s5 = sld [smem:[#allocation0]]
  $region115: #{tpu_custom_call.1} parent=0
    _
  %s7 = ssub.s32 1, %s5
  %s8 = scalar_select 0, %s7, %s5
  $region1: #{tpu_custom_call.1} parent=0
    #allocation2 [shape = 'u8[16384]{0}', space=vmem, size = 0x4000, scoped, tag = 'input window, operand 0']
    #allocation3 [shape = 'u8[40960]{0}', space=vmem, size = 0xa000, scoped, tag = 'output window, operand 0']
    #allocation4 [shape = 's32[2]{0}', space=sflag, size = 0x8, scoped, tag = 'scoped memory for tpu_custom_call.1']
    %9 = vsyncpa [#allocation4], 0
    %s10 = scalar_lea.sflag [#allocation4], 1
    %11 = vsyncpa %s10, 0
    loop: start=0, step=1, limit=4
    $region2: #{tpu_custom_call.1} parent=1 // loop_pre_header
      _
    $region3: #{tpu_custom_call.1} parent=1 // loop_header
      %s13 = sphi 0, %s17
      %p14 = scmp.ge.s32.totalorder %s13, 4
      %s23 = sphi 0, %s25
      %s26 = sphi 0, %s23
      %s27 = sphi 0, %s26
      %s43 = sphi 0, %s27
      %s47 = sphi 0, %s47
      %s49 = sphi 0, %s47
      %s50 = sphi 0, %s49
      %s64 = sphi 0, %s50
      %s68 = sphi 0, %s68
      %s70 = sphi 0, %s68
      %s71 = sphi 0, %s70
      %s85 = sphi 0, %s71
      %s89 = sphi 0, %s89
      %s91 = sphi 0, %s89
      %s92 = sphi 0, %s91
      %s106 = sphi 0, %s92
      %s112 = sphi 0, %s114
      %s115 = sphi 0, %s112
      %s116 = sphi 0, %s115
      %s132 = sphi 0, %s116
    $region4: #{tpu_custom_call.1} parent=1 // loop_header_branch
      %16 = sbr.rel (%p14) target = $region8
    $region5: #{tpu_custom_call.1} parent=1 // loop_body
      %s18 = ssub.s32 %s13, 1
      %s19 = ssub.s32 %s13, 2
      %s20 = sadd.s32 %s13, 1
      %s21 = ssub.s32 %s13, %s20
      %p22 = scmp.eq.s32.totalorder %s21, 0
      %s24 = sadd.s32 %s23, 1
      %s25 = scalar_select %p22, %s23, %s24
      %p28 = pneg %p22
      %p29 = scmp.eq.s32.totalorder %s13, 1
      %p30 = por %p28, %p29
      %p31 = scmp.ne.s32.totalorder %s23, %s26
      %p32 = scmp.eq.s32.totalorder %s13, 0
      %p33 = por %p31, %p32
      %p34 = scmp.ne.s32.totalorder %s23, %s26
      %p35 = scmp.eq.s32.totalorder %s18, 1
      %p36 = por %p34, %p35
      %p37 = scmp.ne.s32.totalorder %s26, %s27
      %p38 = scmp.eq.s32.totalorder %s18, 0
      %p39 = por %p37, %p38
      %p40 = scmp.ne.s32.totalorder %s26, %s27
      %p41 = scmp.eq.s32.totalorder %s19, 1
      %p42 = por %p40, %p41
      %p44 = scmp.ne.s32.totalorder %s27, %s43
      %p45 = scmp.eq.s32.totalorder %s19, 0
      %p46 = por %p44, %p45
      %s48 = sadd.s32 %s47, 1
      %p51 = scmp.eq.s32.totalorder %s13, 1
      %p52 = scmp.ne.s32.totalorder %s47, %s49
      %p53 = scmp.eq.s32.totalorder %s13, 0
      %p54 = por %p52, %p53
      %p55 = scmp.ne.s32.totalorder %s47, %s49
      %p56 = scmp.eq.s32.totalorder %s18, 1
      %p57 = por %p55, %p56
      %p58 = scmp.ne.s32.totalorder %s49, %s50
      %p59 = scmp.eq.s32.totalorder %s18, 0
      %p60 = por %p58, %p59
      %p61 = scmp.ne.s32.totalorder %s49, %s50
      %p62 = scmp.eq.s32.totalorder %s19, 1
      %p63 = por %p61, %p62
      %p65 = scmp.ne.s32.totalorder %s50, %s64
      %p66 = scmp.eq.s32.totalorder %s19, 0
      %p67 = por %p65, %p66
      %s69 = sadd.s32 %s68, 1
      %p72 = scmp.eq.s32.totalorder %s13, 1
      %p73 = scmp.ne.s32.totalorder %s68, %s70
      %p74 = scmp.eq.s32.totalorder %s13, 0
      %p75 = por %p73, %p74
      %p76 = scmp.ne.s32.totalorder %s68, %s70
      %p77 = scmp.eq.s32.totalorder %s18, 1
      %p78 = por %p76, %p77
      %p79 = scmp.ne.s32.totalorder %s70, %s71
      %p80 = scmp.eq.s32.totalorder %s18, 0
      %p81 = por %p79, %p80
      %p82 = scmp.ne.s32.totalorder %s70, %s71
      %p83 = scmp.eq.s32.totalorder %s19, 1
      %p84 = por %p82, %p83
      %p86 = scmp.ne.s32.totalorder %s71, %s85
      %p87 = scmp.eq.s32.totalorder %s19, 0
      %p88 = por %p86, %p87
      %s90 = sadd.s32 %s89, 1
      %p93 = scmp.eq.s32.totalorder %s13, 1
      %p94 = scmp.ne.s32.totalorder %s89, %s91
      %p95 = scmp.eq.s32.totalorder %s13, 0
      %p96 = por %p94, %p95
      %p97 = scmp.ne.s32.totalorder %s89, %s91
      %p98 = scmp.eq.s32.totalorder %s18, 1
      %p99 = por %p97, %p98
      %p100 = scmp.ne.s32.totalorder %s91, %s92
      %p101 = scmp.eq.s32.totalorder %s18, 0
      %p102 = por %p100, %p101
      %p103 = scmp.ne.s32.totalorder %s91, %s92
      %p104 = scmp.eq.s32.totalorder %s19, 1
      %p105 = por %p103, %p104
      %p107 = scmp.ne.s32.totalorder %s92, %s106
      %p108 = scmp.eq.s32.totalorder %s19, 0
      %p109 = por %p107, %p108
      %s110 = ssub.s32 %s13, %s20
      %p111 = scmp.eq.s32.totalorder %s110, 0
      %s113 = sadd.s32 %s112, 1
      %s114 = scalar_select %p111, %s112, %s113
      %p117 = pneg %p111
      %p118 = scmp.eq.s32.totalorder %s13, 1
      %p119 = por %p117, %p118
      %p120 = scmp.ne.s32.totalorder %s112, %s115
      %p121 = scmp.eq.s32.totalorder %s13, 0
      %p122 = por %p120, %p121
      %p123 = scmp.ne.s32.totalorder %s112, %s115
      %p124 = scmp.eq.s32.totalorder %s18, 1
      %p125 = por %p123, %p124
      %p126 = scmp.ne.s32.totalorder %s115, %s116
      %p127 = scmp.eq.s32.totalorder %s18, 0
      %p128 = por %p126, %p127
      %p129 = scmp.ne.s32.totalorder %s115, %s116
      %p130 = scmp.eq.s32.totalorder %s19, 1
      %p131 = por %p129, %p130
      %p133 = scmp.ne.s32.totalorder %s116, %s132
      %p134 = scmp.eq.s32.totalorder %s19, 0
      %p135 = por %p133, %p134
      %p136 = scmp.le.s32.totalorder 1, %s13
      %p137 = scmp.lt.s32.totalorder %s13, 3
      %p138 = pnand %p136, %p137
      %p139 = pneg %p138
      // Predicated region
      $region9: #{tpu_custom_call.1} parent=5 // pred_check
        _
      $region10: #{tpu_custom_call.1} parent=5 // pred_check_branch
        %141 = sbr.rel (%p138) target = $region12
      $region11: #{tpu_custom_call.1} parent=5 // pred_region
        %s142 = ssub.s32 %s13, 1
        // Predicated region
        $region13: #{tpu_custom_call.1} parent=11 // pred_check
          %p143 = pneg %p60
        $region14: #{tpu_custom_call.1} parent=11 // pred_check_branch
          %145 = sbr.rel (%p143) target = $region16
        $region15: #{tpu_custom_call.1} parent=11 // pred_region
          _
        $region16: #{tpu_custom_call.1} parent=11 // pred_fallthru
          _
        // Predicated region
        $region17: #{tpu_custom_call.1} parent=11 // pred_check
          %p146 = pneg %p81
        $region18: #{tpu_custom_call.1} parent=11 // pred_check_branch
          %148 = sbr.rel (%p146) target = $region20
        $region19: #{tpu_custom_call.1} parent=11 // pred_region
          _
        $region20: #{tpu_custom_call.1} parent=11 // pred_fallthru
          _
        // Predicated region
        $region21: #{tpu_custom_call.1} parent=11 // pred_check
          %p149 = pneg %p102
        $region22: #{tpu_custom_call.1} parent=11 // pred_check_branch
          %151 = sbr.rel (%p149) target = $region24
        $region23: #{tpu_custom_call.1} parent=11 // pred_region
          _
        $region24: #{tpu_custom_call.1} parent=11 // pred_fallthru
          _
      $region12: #{tpu_custom_call.1} parent=5 // pred_fallthru
        _
      %p152 = scmp.lt.s32.totalorder %s13, 2
      // Predicated region
      $region25: #{tpu_custom_call.1} parent=5 // pred_check
        %p153 = pneg %p152
      $region26: #{tpu_custom_call.1} parent=5 // pred_check_branch
        %155 = sbr.rel (%p153) target = $region28
      $region27: #{tpu_custom_call.1} parent=5 // pred_region
        // Predicated region
        $region29: #{tpu_custom_call.1} parent=27 // pred_check
          %p156 = pneg %p33
        $region30: #{tpu_custom_call.1} parent=27 // pred_check_branch
          %158 = sbr.rel (%p156) target = $region32
        $region31: #{tpu_custom_call.1} parent=27 // pred_region
          %s159 = sand.u32 %s23, 1
          %s160 = sand.u32 %s23, 1
          %s161 = smul.addr %s160, 16
          %s162 = scalar_lea.vmem [#allocation2], %s161
          %s163 = smul.u32 2, %s13
          %s164 = ssub.s32 3, %s163
          %p165 = scmp.lt.s32.totalorder %s164, 2
          %s166 = scalar_select %p165, %s164, 2
          %s167 = smul.u32 128, %s166
          %p168 = scmp.ne.s32.totalorder 0, %s167
          %s169 = smul.addr %s163, 4
          %s170 = scalar_lea.vmem %s0, %s169
          %s171 = smul.u32 %s166, 4
          // Predicated region
          $region33: #{tpu_custom_call.1} parent=31 // pred_check
            %p172 = pneg %p168
          $region34: #{tpu_custom_call.1} parent=31 // pred_check_branch
            %174 = sbr.rel (%p172) target = $region36
          $region35: #{tpu_custom_call.1} parent=31 // pred_region
            %p175 = scmp.lt.u32.totalorder %s171, 8
            %p176 = pneg %p175
            // Predicated region
            $region37: #{tpu_custom_call.1} parent=35 // pred_check
              _
            $region38: #{tpu_custom_call.1} parent=35 // pred_check_branch
              %178 = sbr.rel (%p175) target = $region40
            $region39: #{tpu_custom_call.1} parent=35 // pred_region
              %s196 = sand.u32 %s171, 7
              %p197 = scmp.eq.s32.totalorder %s196, 0
              // Predicated region
              $region52: #{tpu_custom_call.1} parent=39 // pred_check
                %p198 = pneg %p197
              $region53: #{tpu_custom_call.1} parent=39 // pred_check_branch
                %200 = sbr.rel (%p198) target = $region55
              $region54: #{tpu_custom_call.1} parent=39 // pred_region
                %s201 = sshrl.u32 %s171, 3
                %s202 = sshrl.u32 %s201, 5
                // While loop
                $region56: #{tpu_custom_call.1} parent=54 // loop_pre_header
                  _
                $region57: #{tpu_custom_call.1} parent=54 // loop_header
                  %s206 = sphi 0, %s208
                  %p207 = scmp.ge.s32.totalorder %s206, %s202
                  %s211 = sphi 0, %s344
                  %s212 = sphi %s170, %s347
                  %s213 = sphi %s162, %s348
                $region58: #{tpu_custom_call.1} parent=54 // loop_header_branch
                  %210 = sbr.rel (%p207) target = $region62
                $region59: #{tpu_custom_call.1} parent=54 // loop_body
                  %v214 = vld [vmem:[%s212] sm:$0xff]
                  %215 = vst [vmem:[%s213] sm:$0xff] %v214
                  %v216 = vld [vmem:[%s212 + $0x8] sm:$0xff]
                  %217 = vst [vmem:[%s213 + $0x8] sm:$0xff] %v216
                  %v218 = vld [vmem:[%s212 + $0x10] sm:$0xff]
                  %219 = vst [vmem:[%s213 + $0x10] sm:$0xff] %v218
                  %v220 = vld [vmem:[%s212 + $0x18] sm:$0xff]
                  %221 = vst [vmem:[%s213 + $0x18] sm:$0xff] %v220
                  %v222 = vld [vmem:[%s212 + $0x20] sm:$0xff]
                  %223 = vst [vmem:[%s213 + $0x20] sm:$0xff] %v222
                  %v224 = vld [vmem:[%s212 + $0x28] sm:$0xff]
                  %225 = vst [vmem:[%s213 + $0x28] sm:$0xff] %v224
                  %v226 = vld [vmem:[%s212 + $0x30] sm:$0xff]
                  %227 = vst [vmem:[%s213 + $0x30] sm:$0xff] %v226
                  %v228 = vld [vmem:[%s212 + $0x38] sm:$0xff]
                  %229 = vst [vmem:[%s213 + $0x38] sm:$0xff] %v228
                  %v230 = vld [vmem:[%s212 + $0x40] sm:$0xff]
                  %231 = vst [vmem:[%s213 + $0x40] sm:$0xff] %v230
                  %v232 = vld [vmem:[%s212 + $0x48] sm:$0xff]
                  %233 = vst [vmem:[%s213 + $0x48] sm:$0xff] %v232
                  %v234 = vld [vmem:[%s212 + $0x50] sm:$0xff]
                  %235 = vst [vmem:[%s213 + $0x50] sm:$0xff] %v234
                  %v236 = vld [vmem:[%s212 + $0x58] sm:$0xff]
                  %237 = vst [vmem:[%s213 + $0x58] sm:$0xff] %v236
                  %v238 = vld [vmem:[%s212 + $0x60] sm:$0xff]
                  %239 = vst [vmem:[%s213 + $0x60] sm:$0xff] %v238
                  %v240 = vld [vmem:[%s212 + $0x68] sm:$0xff]
                  %241 = vst [vmem:[%s213 + $0x68] sm:$0xff] %v240
                  %v242 = vld [vmem:[%s212 + $0x70] sm:$0xff]
                  %243 = vst [vmem:[%s213 + $0x70] sm:$0xff] %v242
                  %v244 = vld [vmem:[%s212 + $0x78] sm:$0xff]
                  %245 = vst [vmem:[%s213 + $0x78] sm:$0xff] %v244
                  %v246 = vld [vmem:[%s212 + $0x80] sm:$0xff]
                  %247 = vst [vmem:[%s213 + $0x80] sm:$0xff] %v246
                  %v248 = vld [vmem:[%s212 + $0x88] sm:$0xff]
                  %249 = vst [vmem:[%s213 + $0x88] sm:$0xff] %v248
                  %v250 = vld [vmem:[%s212 + $0x90] sm:$0xff]
                  %251 = vst [vmem:[%s213 + $0x90] sm:$0xff] %v250
                  %v252 = vld [vmem:[%s212 + $0x98] sm:$0xff]
                  %253 = vst [vmem:[%s213 + $0x98] sm:$0xff] %v252
                  %v254 = vld [vmem:[%s212 + $0xa0] sm:$0xff]
                  %255 = vst [vmem:[%s213 + $0xa0] sm:$0xff] %v254
                  %v256 = vld [vmem:[%s212 + $0xa8] sm:$0xff]
                  %257 = vst [vmem:[%s213 + $0xa8] sm:$0xff] %v256
                  %v258 = vld [vmem:[%s212 + $0xb0] sm:$0xff]
                  %259 = vst [vmem:[%s213 + $0xb0] sm:$0xff] %v258
                  %v260 = vld [vmem:[%s212 + $0xb8] sm:$0xff]
                  %261 = vst [vmem:[%s213 + $0xb8] sm:$0xff] %v260
                  %v262 = vld [vmem:[%s212 + $0xc0] sm:$0xff]
                  %263 = vst [vmem:[%s213 + $0xc0] sm:$0xff] %v262
                  %v264 = vld [vmem:[%s212 + $0xc8] sm:$0xff]
                  %265 = vst [vmem:[%s213 + $0xc8] sm:$0xff] %v264
                  %v266 = vld [vmem:[%s212 + $0xd0] sm:$0xff]
                  %267 = vst [vmem:[%s213 + $0xd0] sm:$0xff] %v266
                  %v268 = vld [vmem:[%s212 + $0xd8] sm:$0xff]
                  %269 = vst [vmem:[%s213 + $0xd8] sm:$0xff] %v268
                  %v270 = vld [vmem:[%s212 + $0xe0] sm:$0xff]
                  %271 = vst [vmem:[%s213 + $0xe0] sm:$0xff] %v270
                  %v272 = vld [vmem:[%s212 + $0xe8] sm:$0xff]
                  %273 = vst [vmem:[%s213 + $0xe8] sm:$0xff] %v272
                  %v274 = vld [vmem:[%s212 + $0xf0] sm:$0xff]
                  %275 = vst [vmem:[%s213 + $0xf0] sm:$0xff] %v274
                  %v276 = vld [vmem:[%s212 + $0xf8] sm:$0xff]
                  %277 = vst [vmem:[%s213 + $0xf8] sm:$0xff] %v276
                  %v278 = vld [vmem:[%s212 + $0xc] sm:$0xff]
                  %279 = vst [vmem:[%s213 + $0x8] sm:$0xff] %v278
                  %v280 = vld [vmem:[%s212 + $0x14] sm:$0xff]
                  %281 = vst [vmem:[%s213 + $0x10] sm:$0xff] %v280
                  %v282 = vld [vmem:[%s212 + $0x1c] sm:$0xff]
                  %283 = vst [vmem:[%s213 + $0x18] sm:$0xff] %v282
                  %v284 = vld [vmem:[%s212 + $0x24] sm:$0xff]
                  %285 = vst [vmem:[%s213 + $0x20] sm:$0xff] %v284
                  %v286 = vld [vmem:[%s212 + $0x2c] sm:$0xff]
                  %287 = vst [vmem:[%s213 + $0x28] sm:$0xff] %v286
                  %v288 = vld [vmem:[%s212 + $0x34] sm:$0xff]
                  %289 = vst [vmem:[%s213 + $0x30] sm:$0xff] %v288
                  %v290 = vld [vmem:[%s212 + $0x3c] sm:$0xff]
                  %291 = vst [vmem:[%s213 + $0x38] sm:$0xff] %v290
                  %v292 = vld [vmem:[%s212 + $0x44] sm:$0xff]
                  %293 = vst [vmem:[%s213 + $0x40] sm:$0xff] %v292
                  %v294 = vld [vmem:[%s212 + $0x4c] sm:$0xff]
                  %295 = vst [vmem:[%s213 + $0x48] sm:$0xff] %v294
                  %v296 = vld [vmem:[%s212 + $0x54] sm:$0xff]
                  %297 = vst [vmem:[%s213 + $0x50] sm:$0xff] %v296
                  %v298 = vld [vmem:[%s212 + $0x5c] sm:$0xff]
                  %299 = vst [vmem:[%s213 + $0x58] sm:$0xff] %v298
                  %v300 = vld [vmem:[%s212 + $0x64] sm:$0xff]
                  %301 = vst [vmem:[%s213 + $0x60] sm:$0xff] %v300
                  %v302 = vld [vmem:[%s212 + $0x6c] sm:$0xff]
                  %303 = vst [vmem:[%s213 + $0x68] sm:$0xff] %v302
                  %v304 = vld [vmem:[%s212 + $0x74] sm:$0xff]
                  %305 = vst [vmem:[%s213 + $0x70] sm:$0xff] %v304
                  %v306 = vld [vmem:[%s212 + $0x7c] sm:$0xff]
                  %307 = vst [vmem:[%s213 + $0x78] sm:$0xff] %v306
                  %v308 = vld [vmem:[%s212 + $0x84] sm:$0xff]
                  %309 = vst [vmem:[%s213 + $0x80] sm:$0xff] %v308
                  %v310 = vld [vmem:[%s212 + $0x8c] sm:$0xff]
                  %311 = vst [vmem:[%s213 + $0x88] sm:$0xff] %v310
                  %v312 = vld [vmem:[%s212 + $0x94] sm:$0xff]
                  %313 = vst [vmem:[%s213 + $0x90] sm:$0xff] %v312
                  %v314 = vld [vmem:[%s212 + $0x9c] sm:$0xff]
                  %315 = vst [vmem:[%s213 + $0x98] sm:$0xff] %v314
                  %v316 = vld [vmem:[%s212 + $0xa4] sm:$0xff]
                  %317 = vst [vmem:[%s213 + $0xa0] sm:$0xff] %v316
                  %v318 = vld [vmem:[%s212 + $0xac] sm:$0xff]
                  %319 = vst [vmem:[%s213 + $0xa8] sm:$0xff] %v318
                  %v320 = vld [vmem:[%s212 + $0xb4] sm:$0xff]
                  %321 = vst [vmem:[%s213 + $0xb0] sm:$0xff] %v320
                  %v322 = vld [vmem:[%s212 + $0xbc] sm:$0xff]
                  %323 = vst [vmem:[%s213 + $0xb8] sm:$0xff] %v322
                  %v324 = vld [vmem:[%s212 + $0xc4] sm:$0xff]
                  %325 = vst [vmem:[%s213 + $0xc0] sm:$0xff] %v324
                  %v326 = vld [vmem:[%s212 + $0xcc] sm:$0xff]
                  %327 = vst [vmem:[%s213 + $0xc8] sm:$0xff] %v326
                  %v328 = vld [vmem:[%s212 + $0xd4] sm:$0xff]
                  %329 = vst [vmem:[%s213 + $0xd0] sm:$0xff] %v328
                  %v330 = vld [vmem:[%s212 + $0xdc] sm:$0xff]
                  %331 = vst [vmem:[%s213 + $0xd8] sm:$0xff] %v330
                  %v332 = vld [vmem:[%s212 + $0xe4] sm:$0xff]
                  %333 = vst [vmem:[%s213 + $0xe0] sm:$0xff] %v332
                  %v334 = vld [vmem:[%s212 + $0xec] sm:$0xff]
                  %335 = vst [vmem:[%s213 + $0xe8] sm:$0xff] %v334
                  %v336 = vld [vmem:[%s212 + $0xf4] sm:$0xff]
                  %337 = vst [vmem:[%s213 + $0xf0] sm:$0xff] %v336
                  %v338 = vld [vmem:[%s212 + $0xfc] sm:$0xff]
                  %339 = vst [vmem:[%s213 + $0xf8] sm:$0xff] %v338
                  %v340 = vld [vmem:[%s212 + $0x104] sm:$0xff]
                  %341 = vst [vmem:[%s213 + $0x100] sm:$0xff] %v340
                  %s342 = sadd.s32 1, %s211
                  %p343 = scmp.ge.s32.totalorder %s342, %s202
                  %s344 = scalar_select %p343, 0, %s342
                  %s345 = smul.u32 %s344, 256
                  %s346 = smul.u32 %s344, 256
                  %s347 = scalar_lea.vmem %s170, %s345
                  %s348 = scalar_lea.vmem %s162, %s346 [#allocation2]
                $region60: #{tpu_custom_call.1} parent=54 // loop_footer
                  %s208 = sadd.s32 %s206, 1
                $region61: #{tpu_custom_call.1} parent=54 // loop_footer_branch
                  %205 = sbr.rel target = $region57
                $region62: #{tpu_custom_call.1} parent=54 // loop_exit
                  _
                %s349 = sshrl.u32 %s201, 5
                %s350 = sand.u32 %s201, 31
                %s351 = smul.u32 %s349, 32
                %s352 = smul.u32 128, %s351
                %s353 = sshra.s32 %s352, 4
                %s354 = scalar_lea.vmem %s170, %s353
                %s355 = smul.u32 128, %s351
                %s356 = sshra.s32 %s355, 4
                %s357 = scalar_lea.vmem %s162, %s356 [#allocation2]
                // While loop
                $region63: #{tpu_custom_call.1} parent=54 // loop_pre_header
                  _
                $region64: #{tpu_custom_call.1} parent=54 // loop_header
                  %s361 = sphi 0, %s363
                  %p362 = scmp.ge.s32.totalorder %s361, %s350
                  %s366 = sphi 0, %s375
                  %s367 = sphi %s354, %s378
                  %s368 = sphi %s357, %s379
                $region65: #{tpu_custom_call.1} parent=54 // loop_header_branch
                  %365 = sbr.rel (%p362) target = $region69
                $region66: #{tpu_custom_call.1} parent=54 // loop_body
                  %v369 = vld [vmem:[%s367] sm:$0xff]
                  %370 = vst [vmem:[%s368] sm:$0xff] %v369
                  %v371 = vld [vmem:[%s367 + $0xc] sm:$0xff]
                  %372 = vst [vmem:[%s368 + $0x8] sm:$0xff] %v371
                  %s373 = sadd.s32 1, %s366
                  %p374 = scmp.ge.s32.totalorder %s373, %s350
                  %s375 = scalar_select %p374, 0, %s373
                  %s376 = smul.u32 %s375, 8
                  %s377 = smul.u32 %s375, 8
                  %s378 = scalar_lea.vmem %s354, %s376
                  %s379 = scalar_lea.vmem %s357, %s377 [#allocation2]
                $region67: #{tpu_custom_call.1} parent=54 // loop_footer
                  %s363 = sadd.s32 %s361, 1
                $region68: #{tpu_custom_call.1} parent=54 // loop_footer_branch
                  %360 = sbr.rel target = $region64
                $region69: #{tpu_custom_call.1} parent=54 // loop_exit
                  _
              $region55: #{tpu_custom_call.1} parent=39 // pred_fallthru
                _
              %p380 = pneg %p197
              // Predicated region
              $region70: #{tpu_custom_call.1} parent=39 // pred_check
                _
              $region71: #{tpu_custom_call.1} parent=39 // pred_check_branch
                %382 = sbr.rel (%p197) target = $region73
              $region72: #{tpu_custom_call.1} parent=39 // pred_region
                %s383 = sand.u32 %s171, 7
                %s384 = ssub.s32 %s171, %s383
                %s385 = scalar_lea.vmem %s170, %s384
                %s386 = ssub.s32 %s171, %s383
                %s387 = scalar_lea.vmem %s162, %s386 [#allocation2]
                %s388 = sshrl.u32 %s171, 3
                %s389 = sshrl.u32 %s388, 5
                // While loop
                $region74: #{tpu_custom_call.1} parent=72 // loop_pre_header
                  _
                $region75: #{tpu_custom_call.1} parent=72 // loop_header
                  %s393 = sphi 0, %s395
                  %p394 = scmp.ge.s32.totalorder %s393, %s389
                  %s398 = sphi 0, %s531
                  %s399 = sphi %s170, %s534
                  %s400 = sphi %s162, %s535
                $region76: #{tpu_custom_call.1} parent=72 // loop_header_branch
                  %397 = sbr.rel (%p394) target = $region80
                $region77: #{tpu_custom_call.1} parent=72 // loop_body
                  %v401 = vld [vmem:[%s399] sm:$0xff]
                  %402 = vst [vmem:[%s400] sm:$0xff] %v401
                  %v403 = vld [vmem:[%s399 + $0x8] sm:$0xff]
                  %404 = vst [vmem:[%s400 + $0x8] sm:$0xff] %v403
                  %v405 = vld [vmem:[%s399 + $0x10] sm:$0xff]
                  %406 = vst [vmem:[%s400 + $0x10] sm:$0xff] %v405
                  %v407 = vld [vmem:[%s399 + $0x18] sm:$0xff]
                  %408 = vst [vmem:[%s400 + $0x18] sm:$0xff] %v407
                  %v409 = vld [vmem:[%s399 + $0x20] sm:$0xff]
                  %410 = vst [vmem:[%s400 + $0x20] sm:$0xff] %v409
                  %v411 = vld [vmem:[%s399 + $0x28] sm:$0xff]
                  %412 = vst [vmem:[%s400 + $0x28] sm:$0xff] %v411
                  %v413 = vld [vmem:[%s399 + $0x30] sm:$0xff]
                  %414 = vst [vmem:[%s400 + $0x30] sm:$0xff] %v413
                  %v415 = vld [vmem:[%s399 + $0x38] sm:$0xff]
                  %416 = vst [vmem:[%s400 + $0x38] sm:$0xff] %v415
                  %v417 = vld [vmem:[%s399 + $0x40] sm:$0xff]
                  %418 = vst [vmem:[%s400 + $0x40] sm:$0xff] %v417
                  %v419 = vld [vmem:[%s399 + $0x48] sm:$0xff]
                  %420 = vst [vmem:[%s400 + $0x48] sm:$0xff] %v419
                  %v421 = vld [vmem:[%s399 + $0x50] sm:$0xff]
                  %422 = vst [vmem:[%s400 + $0x50] sm:$0xff] %v421
                  %v423 = vld [vmem:[%s399 + $0x58] sm:$0xff]
                  %424 = vst [vmem:[%s400 + $0x58] sm:$0xff] %v423
                  %v425 = vld [vmem:[%s399 + $0x60] sm:$0xff]
                  %426 = vst [vmem:[%s400 + $0x60] sm:$0xff] %v425
                  %v427 = vld [vmem:[%s399 + $0x68] sm:$0xff]
                  %428 = vst [vmem:[%s400 + $0x68] sm:$0xff] %v427
                  %v429 = vld [vmem:[%s399 + $0x70] sm:$0xff]
                  %430 = vst [vmem:[%s400 + $0x70] sm:$0xff] %v429
                  %v431 = vld [vmem:[%s399 + $0x78] sm:$0xff]
                  %432 = vst [vmem:[%s400 + $0x78] sm:$0xff] %v431
                  %v433 = vld [vmem:[%s399 + $0x80] sm:$0xff]
                  %434 = vst [vmem:[%s400 + $0x80] sm:$0xff] %v433
                  %v435 = vld [vmem:[%s399 + $0x88] sm:$0xff]
                  %436 = vst [vmem:[%s400 + $0x88] sm:$0xff] %v435
                  %v437 = vld [vmem:[%s399 + $0x90] sm:$0xff]
                  %438 = vst [vmem:[%s400 + $0x90] sm:$0xff] %v437
                  %v439 = vld [vmem:[%s399 + $0x98] sm:$0xff]
                  %440 = vst [vmem:[%s400 + $0x98] sm:$0xff] %v439
                  %v441 = vld [vmem:[%s399 + $0xa0] sm:$0xff]
                  %442 = vst [vmem:[%s400 + $0xa0] sm:$0xff] %v441
                  %v443 = vld [vmem:[%s399 + $0xa8] sm:$0xff]
                  %444 = vst [vmem:[%s400 + $0xa8] sm:$0xff] %v443
                  %v445 = vld [vmem:[%s399 + $0xb0] sm:$0xff]
                  %446 = vst [vmem:[%s400 + $0xb0] sm:$0xff] %v445
                  %v447 = vld [vmem:[%s399 + $0xb8] sm:$0xff]
                  %448 = vst [vmem:[%s400 + $0xb8] sm:$0xff] %v447
                  %v449 = vld [vmem:[%s399 + $0xc0] sm:$0xff]
                  %450 = vst [vmem:[%s400 + $0xc0] sm:$0xff] %v449
                  %v451 = vld [vmem:[%s399 + $0xc8] sm:$0xff]
                  %452 = vst [vmem:[%s400 + $0xc8] sm:$0xff] %v451
                  %v453 = vld [vmem:[%s399 + $0xd0] sm:$0xff]
                  %454 = vst [vmem:[%s400 + $0xd0] sm:$0xff] %v453
                  %v455 = vld [vmem:[%s399 + $0xd8] sm:$0xff]
                  %456 = vst [vmem:[%s400 + $0xd8] sm:$0xff] %v455
                  %v457 = vld [vmem:[%s399 + $0xe0] sm:$0xff]
                  %458 = vst [vmem:[%s400 + $0xe0] sm:$0xff] %v457
                  %v459 = vld [vmem:[%s399 + $0xe8] sm:$0xff]
                  %460 = vst [vmem:[%s400 + $0xe8] sm:$0xff] %v459
                  %v461 = vld [vmem:[%s399 + $0xf0] sm:$0xff]
                  %462 = vst [vmem:[%s400 + $0xf0] sm:$0xff] %v461
                  %v463 = vld [vmem:[%s399 + $0xf8] sm:$0xff]
                  %464 = vst [vmem:[%s400 + $0xf8] sm:$0xff] %v463
                  %v465 = vld [vmem:[%s399 + $0xc] sm:$0xff]
                  %466 = vst [vmem:[%s400 + $0x8] sm:$0xff] %v465
                  %v467 = vld [vmem:[%s399 + $0x14] sm:$0xff]
                  %468 = vst [vmem:[%s400 + $0x10] sm:$0xff] %v467
                  %v469 = vld [vmem:[%s399 + $0x1c] sm:$0xff]
                  %470 = vst [vmem:[%s400 + $0x18] sm:$0xff] %v469
                  %v471 = vld [vmem:[%s399 + $0x24] sm:$0xff]
                  %472 = vst [vmem:[%s400 + $0x20] sm:$0xff] %v471
                  %v473 = vld [vmem:[%s399 + $0x2c] sm:$0xff]
                  %474 = vst [vmem:[%s400 + $0x28] sm:$0xff] %v473
                  %v475 = vld [vmem:[%s399 + $0x34] sm:$0xff]
                  %476 = vst [vmem:[%s400 + $0x30] sm:$0xff] %v475
                  %v477 = vld [vmem:[%s399 + $0x3c] sm:$0xff]
                  %478 = vst [vmem:[%s400 + $0x38] sm:$0xff] %v477
                  %v479 = vld [vmem:[%s399 + $0x44] sm:$0xff]
                  %480 = vst [vmem:[%s400 + $0x40] sm:$0xff] %v479
                  %v481 = vld [vmem:[%s399 + $0x4c] sm:$0xff]
                  %482 = vst [vmem:[%s400 + $0x48] sm:$0xff] %v481
                  %v483 = vld [vmem:[%s399 + $0x54] sm:$0xff]
                  %484 = vst [vmem:[%s400 + $0x50] sm:$0xff] %v483
                  %v485 = vld [vmem:[%s399 + $0x5c] sm:$0xff]
                  %486 = vst [vmem:[%s400 + $0x58] sm:$0xff] %v485
                  %v487 = vld [vmem:[%s399 + $0x64] sm:$0xff]
                  %488 = vst [vmem:[%s400 + $0x60] sm:$0xff] %v487
                  %v489 = vld [vmem:[%s399 + $0x6c] sm:$0xff]
                  %490 = vst [vmem:[%s400 + $0x68] sm:$0xff] %v489
                  %v491 = vld [vmem:[%s399 + $0x74] sm:$0xff]
                  %492 = vst [vmem:[%s400 + $0x70] sm:$0xff] %v491
                  %v493 = vld [vmem:[%s399 + $0x7c] sm:$0xff]
                  %494 = vst [vmem:[%s400 + $0x78] sm:$0xff] %v493
                  %v495 = vld [vmem:[%s399 + $0x84] sm:$0xff]
                  %496 = vst [vmem:[%s400 + $0x80] sm:$0xff] %v495
                  %v497 = vld [vmem:[%s399 + $0x8c] sm:$0xff]
                  %498 = vst [vmem:[%s400 + $0x88] sm:$0xff] %v497
                  %v499 = vld [vmem:[%s399 + $0x94] sm:$0xff]
                  %500 = vst [vmem:[%s400 + $0x90] sm:$0xff] %v499
                  %v501 = vld [vmem:[%s399 + $0x9c] sm:$0xff]
                  %502 = vst [vmem:[%s400 + $0x98] sm:$0xff] %v501
                  %v503 = vld [vmem:[%s399 + $0xa4] sm:$0xff]
                  %504 = vst [vmem:[%s400 + $0xa0] sm:$0xff] %v503
                  %v505 = vld [vmem:[%s399 + $0xac] sm:$0xff]
                  %506 = vst [vmem:[%s400 + $0xa8] sm:$0xff] %v505
                  %v507 = vld [vmem:[%s399 + $0xb4] sm:$0xff]
                  %508 = vst [vmem:[%s400 + $0xb0] sm:$0xff] %v507
                  %v509 = vld [vmem:[%s399 + $0xbc] sm:$0xff]
                  %510 = vst [vmem:[%s400 + $0xb8] sm:$0xff] %v509
                  %v511 = vld [vmem:[%s399 + $0xc4] sm:$0xff]
                  %512 = vst [vmem:[%s400 + $0xc0] sm:$0xff] %v511
                  %v513 = vld [vmem:[%s399 + $0xcc] sm:$0xff]
                  %514 = vst [vmem:[%s400 + $0xc8] sm:$0xff] %v513
                  %v515 = vld [vmem:[%s399 + $0xd4] sm:$0xff]
                  %516 = vst [vmem:[%s400 + $0xd0] sm:$0xff] %v515
                  %v517 = vld [vmem:[%s399 + $0xdc] sm:$0xff]
                  %518 = vst [vmem:[%s400 + $0xd8] sm:$0xff] %v517
                  %v519 = vld [vmem:[%s399 + $0xe4] sm:$0xff]
                  %520 = vst [vmem:[%s400 + $0xe0] sm:$0xff] %v519
                  %v521 = vld [vmem:[%s399 + $0xec] sm:$0xff]
                  %522 = vst [vmem:[%s400 + $0xe8] sm:$0xff] %v521
                  %v523 = vld [vmem:[%s399 + $0xf4] sm:$0xff]
                  %524 = vst [vmem:[%s400 + $0xf0] sm:$0xff] %v523
                  %v525 = vld [vmem:[%s399 + $0xfc] sm:$0xff]
                  %526 = vst [vmem:[%s400 + $0xf8] sm:$0xff] %v525
                  %v527 = vld [vmem:[%s399 + $0x104] sm:$0xff]
                  %528 = vst [vmem:[%s400 + $0x100] sm:$0xff] %v527
                  %s529 = sadd.s32 1, %s398
                  %p530 = scmp.ge.s32.totalorder %s529, %s389
                  %s531 = scalar_select %p530, 0, %s529
                  %s532 = smul.u32 %s531, 256
                  %s533 = smul.u32 %s531, 256
                  %s534 = scalar_lea.vmem %s170, %s532
                  %s535 = scalar_lea.vmem %s162, %s533 [#allocation2]
                $region78: #{tpu_custom_call.1} parent=72 // loop_footer
                  %s395 = sadd.s32 %s393, 1
                $region79: #{tpu_custom_call.1} parent=72 // loop_footer_branch
                  %392 = sbr.rel target = $region75
                $region80: #{tpu_custom_call.1} parent=72 // loop_exit
                  _
                %s536 = sshrl.u32 %s388, 5
                %s537 = sand.u32 %s388, 31
                %s538 = smul.u32 %s536, 32
                %s539 = smul.u32 128, %s538
                %s540 = sshra.s32 %s539, 4
                %s541 = scalar_lea.vmem %s170, %s540
                %s542 = smul.u32 128, %s538
                %s543 = sshra.s32 %s542, 4
                %s544 = scalar_lea.vmem %s162, %s543 [#allocation2]
                // While loop
                $region81: #{tpu_custom_call.1} parent=72 // loop_pre_header
                  _
                $region82: #{tpu_custom_call.1} parent=72 // loop_header
                  %s548 = sphi 0, %s550
                  %p549 = scmp.ge.s32.totalorder %s548, %s537
                  %s553 = sphi 0, %s562
                  %s554 = sphi %s541, %s565
                  %s555 = sphi %s544, %s566
                $region83: #{tpu_custom_call.1} parent=72 // loop_header_branch
                  %552 = sbr.rel (%p549) target = $region87
                $region84: #{tpu_custom_call.1} parent=72 // loop_body
                  %v556 = vld [vmem:[%s554] sm:$0xff]
                  %557 = vst [vmem:[%s555] sm:$0xff] %v556
                  %v558 = vld [vmem:[%s554 + $0xc] sm:$0xff]
                  %559 = vst [vmem:[%s555 + $0x8] sm:$0xff] %v558
                  %s560 = sadd.s32 1, %s553
                  %p561 = scmp.ge.s32.totalorder %s560, %s537
                  %s562 = scalar_select %p561, 0, %s560
                  %s563 = smul.u32 %s562, 8
                  %s564 = smul.u32 %s562, 8
                  %s565 = scalar_lea.vmem %s541, %s563
                  %s566 = scalar_lea.vmem %s544, %s564 [#allocation2]
                $region85: #{tpu_custom_call.1} parent=72 // loop_footer
                  %s550 = sadd.s32 %s548, 1
                $region86: #{tpu_custom_call.1} parent=72 // loop_footer_branch
                  %547 = sbr.rel target = $region82
                $region87: #{tpu_custom_call.1} parent=72 // loop_exit
                  _
                %s567 = sshll.u32 1, %s383
                %s568 = ssub.s32 %s567, 1
                loop: start=0, step=1, limit=1
                $region88: #{tpu_custom_call.1} parent=72 // loop_pre_header
                  _
                $region89: #{tpu_custom_call.1} parent=72 // loop_header
                  %s570 = sphi 0, %s574
                  %p571 = scmp.ge.s32.totalorder %s570, 1
                  %s575 = sphi %s385, %s385
                  %s576 = sphi %s387, %s387
                $region90: #{tpu_custom_call.1} parent=72 // loop_header_branch
                  %573 = sbr.rel (%p571) target = $region94
                $region91: #{tpu_custom_call.1} parent=72 // loop_body
                  %v577 = vld [vmem:[%s575] sm:%s568]
                  %578 = vst [vmem:[%s576] sm:%s568] %v577
                  %v579 = vld [vmem:[%s575 + $0xc] sm:%s568]
                  %580 = vst [vmem:[%s576 + $0x8] sm:%s568] %v579
                $region92: #{tpu_custom_call.1} parent=72 // loop_footer
                  %s574 = sadd.s32 1, %s570
                $region93: #{tpu_custom_call.1} parent=72 // loop_footer_branch
                  %569 = sbr.rel target = $region89
                $region94: #{tpu_custom_call.1} parent=72 // loop_exit
                  _
              $region73: #{tpu_custom_call.1} parent=39 // pred_fallthru
                _
            $region40: #{tpu_custom_call.1} parent=35 // pred_fallthru
              _
            // Predicated region
            $region41: #{tpu_custom_call.1} parent=35 // pred_check
              %p179 = pneg %p175
            $region42: #{tpu_custom_call.1} parent=35 // pred_check_branch
              %181 = sbr.rel (%p179) target = $region44
            $region43: #{tpu_custom_call.1} parent=35 // pred_region
              %s182 = sshll.u32 1, %s171
              %s183 = ssub.s32 %s182, 1
              loop: start=0, step=1, limit=1
              $region45: #{tpu_custom_call.1} parent=43 // loop_pre_header
                _
              $region46: #{tpu_custom_call.1} parent=43 // loop_header
                %s185 = sphi 0, %s189
                %p186 = scmp.ge.s32.totalorder %s185, 1
                %s190 = sphi %s170, %s170
                %s191 = sphi %s162, %s162
              $region47: #{tpu_custom_call.1} parent=43 // loop_header_branch
                %188 = sbr.rel (%p186) target = $region51
              $region48: #{tpu_custom_call.1} parent=43 // loop_body
                %v192 = vld [vmem:[%s190] sm:%s183]
                %193 = vst [vmem:[%s191] sm:%s183] %v192
                %v194 = vld [vmem:[%s190 + $0xc] sm:%s183]
                %195 = vst [vmem:[%s191 + $0x8] sm:%s183] %v194
              $region49: #{tpu_custom_call.1} parent=43 // loop_footer
                %s189 = sadd.s32 1, %s185
              $region50: #{tpu_custom_call.1} parent=43 // loop_footer_branch
                %184 = sbr.rel target = $region46
              $region51: #{tpu_custom_call.1} parent=43 // loop_exit
                _
            $region44: #{tpu_custom_call.1} parent=35 // pred_fallthru
              _
          $region36: #{tpu_custom_call.1} parent=31 // pred_fallthru
            _
          %581 = vnop
        $region32: #{tpu_custom_call.1} parent=27 // pred_fallthru
          _
      $region28: #{tpu_custom_call.1} parent=5 // pred_fallthru
        _
      %p582 = scmp.le.s32.totalorder 1, %s13
      %p583 = scmp.lt.s32.totalorder %s13, 3
      %p584 = pnand %p582, %p583
      %p585 = pneg %p584
      // Predicated region
      $region95: #{tpu_custom_call.1} parent=5 // pred_check
        _
      $region96: #{tpu_custom_call.1} parent=5 // pred_check_branch
        %587 = sbr.rel (%p584) target = $region98
      $region97: #{tpu_custom_call.1} parent=5 // pred_region
        %s588 = ssub.s32 %s13, 1
        %s589 = sand.u32 %s26, 1
        %s590 = sand.u32 %s26, 1
        %s591 = smul.addr %s590, 16
        %s592 = scalar_lea.vmem [#allocation2], %s591
        // Predicated region
        $region99: #{tpu_custom_call.1} parent=97 // pred_check
          %p593 = pneg %p39
        $region100: #{tpu_custom_call.1} parent=97 // pred_check_branch
          %595 = sbr.rel (%p593) target = $region102
        $region101: #{tpu_custom_call.1} parent=97 // pred_region
          _
        $region102: #{tpu_custom_call.1} parent=97 // pred_fallthru
          _
        %s596 = sand.u32 %s26, 1
        %s597 = sand.u32 %s26, 1
        %s598 = smul.addr %s597, 16
        %s599 = scalar_lea.vmem [#allocation2], %s598
        %p600 = pneg %p39
        %p601 = pneg %p36
        %p602 = pneg %p60
        %p603 = pneg %p57
        %p604 = pneg %p81
        %p605 = pneg %p78
        %p606 = pneg %p102
        %p607 = pneg %p99
        %p608 = pneg %p128
        %p609 = pneg %p125
        %s610 = sand.u32 %s115, 1
        %s611 = scalar_lea.sflag [#allocation4], %s610
        %s612 = sand.u32 %s115, 1
        %s613 = smul.addr %s612, 40
        %s614 = scalar_lea.vmem [#allocation3], %s613
        %s615 = smul.u32 2, %s18
        %s616 = ssub.s32 3, %s615
        %p617 = scmp.lt.s32.totalorder %s616, 2
        %s618 = scalar_select %p617, %s616, 2
        %s619 = smul.u32 128, %s618
        %s620 = smul.u32 2, %s18
        %s621 = ssub.s32 3, %s620
        %p622 = scmp.lt.s32.totalorder %s621, 2
        %s623 = scalar_select %p622, %s621, 2
        %s624 = smul.u32 320, %s623
        %v626 = vld [vmem:[%s592] sm:$0xff]
        %v627 = vld [vmem:[%s592 + $0x8] sm:$0xff]
        %v628 = vld [vmem:[%s3] sm:$0xff]
        %v629 = vld [vmem:[%s3 + $0x8] sm:$0xff]
        %v630 = vld [vmem:[%s3 + $0x10] sm:$0xf]
        %v631 = vld [vmem:[%s3 + $0x8] sm:$0x3]
        %v632 = vld [vmem:[%s1] sm:$0xf]
        %v633 = vld [vmem:[%s1 + $0x4] sm:$0xf]
        %v634 = vld [vmem:[%s1 + $0x8] sm:$0x3]
        %636 = vset.pattern.permute.xlu0 0
        %637 = vperm.xlu0 %636, %v628
        %v638 = vpop.permute.xlu0 %637
        %641 = vset.pattern.permute.xlu0 0
        %642 = vperm.xlu0 %641, %v629
        %v643 = vpop.permute.xlu0 %642
        %646 = vset.pattern.permute.xlu0 0
        %647 = vperm.xlu0 %646, %v630
        %v648 = vpop.permute.xlu0 %647
        %v653 = vunpack.c.l.b16 %v632
        %v654 = vunpack.c.l.b16 %v633
        %v655 = vunpack.c.l.b16 %v634
        %v656 = vpack.c.b16 %v654, %v653
        %v657 = vpack.c.b16 %v655, %v655
        %v660 = vunpack.c.l.b16 %v626
        %v661 = vunpack.c.h.b16 %v626
        %v662 = vunpack.c.l.b16 %v627
        %v663 = vunpack.c.h.b16 %v627
        %v664 = vpack.c.b16 %v662, %v660
        %v665 = vpack.c.b16 %v663, %v661
        %vm668 = vcmask 130048
        %v670 = vsel %vm668, %v656, 0
        %v673 = vsel %vm668, %v657, 0
        %675 = vmatprep.subr.bf16.mxu0 0
        %676 = vmatpush1.bf16.msra.mxu0 0
        %677 = vmatprep.subr.bf16.mxu0 0
        %678 = vmatpush1.bf16.msra.mxu0 0
        %679 = vmatprep.subr.bf16.mxu0 0
        %680 = vmatpush1.bf16.msra.mxu0 0
        %681 = vmatprep.subr.bf16.mxu0 0
        %682 = vmatpush1.bf16.msra.mxu0 0
        %683 = vmatprep.subr.bf16.mxu0 0
        %684 = vmatpush1.bf16.msra.mxu0 0
        %685 = vmatprep.subr.bf16.mxu0 0
        %686 = vmatpush1.bf16.msra.mxu0 0
        %687 = vmatprep.subr.bf16.mxu0 0
        %688 = vmatpush1.bf16.msra.mxu0 0
        %689 = vmatprep.subr.bf16.mxu0 %v665
        %690 = vmatpush1.bf16.msra.mxu0 %v664
        %691 = vmatprep.subr.bf16.mxu0 0
        %692 = vmatpush2.bf16.msra.mxu0 0
        %693 = vmatprep.subr.bf16.mxu0 0
        %694 = vmatpush2.bf16.msra.mxu0 0
        %695 = vmatprep.subr.bf16.mxu0 0
        %696 = vmatpush2.bf16.msra.mxu0 0
        %697 = vmatprep.subr.bf16.mxu0 0
        %698 = vmatpush2.bf16.msra.mxu0 0
        %699 = vmatprep.subr.bf16.mxu0 0
        %700 = vmatpush2.bf16.msra.mxu0 0
        %701 = vmatprep.subr.bf16.mxu0 0
        %702 = vmatpush2.bf16.msra.mxu0 0
        %703 = vmatprep.subr.bf16.mxu0 0
        %704 = vmatpush2.bf16.msra.mxu0 0
        %705 = vmatprep.subr.bf16.mxu0 0
        %706 = vmatpush2.bf16.msra.mxu0 0
        %707 = vmatprep.mubr.bf16.mxu0 0
        %708 = vmatmul.mubr.bf16.gmra.mxu0 %v670
        %v709 = vpop.f32.mrf.mxu0
        %v710 = vadd.f32 %v638, %v709
        %v711 = vpop.f32.mrf.mxu0
        %v712 = vadd.f32 %v638, %v711
        %v713 = vpop.f32.mrf.mxu0
        %v714 = vadd.f32 %v643, %v713
        %v715 = vpop.f32.mrf.mxu0
        %v716 = vadd.f32 %v643, %v715
        %717 = vmatprep.mubr.bf16.mxu0 0
        %718 = vmatmul.mubr.bf16.gmra.mxu0 %v673
        %v719 = vpop.f32.mrf.mxu0
        %v720 = vadd.f32 %v648, %v719
        %v721 = vpop.f32.mrf.mxu0
        %v722 = vadd.f32 %v648, %v721
        %v723 = vpop.f32.mrf.mxu0
        %v724 = vpop.f32.mrf.mxu0
        %725 = vdwg.mxu0
        %v726 = vtanh.pop %v710
        %v727 = vtanh.pop %v712
        %v728 = vtanh.pop %v714
        %v729 = vtanh.pop %v716
        %v730 = vtanh.pop %v720
        %v731 = vtanh.pop %v722
        %v732 = vpack.c.bf16 %v728, %v726
        %v733 = vpack.c.bf16 %v729, %v727
        %v734 = vpack.c.bf16 %v730, %v730
        %v735 = vpack.c.bf16 %v731, %v731
        %v736 = vld [vmem:[%s2] sm:$0xf]
        %v737 = vld [vmem:[%s2 + $0x4] sm:$0x1]
        %738 = vset.pattern.permute.xlu0 1
        %739 = vperm.xlu0 %738, %v628
        %v740 = vpop.permute.xlu0 %739
        %743 = vset.pattern.permute.xlu0 1
        %744 = vperm.xlu0 %743, %v631
        %v745 = vpop.permute.xlu0 %744
        %v749 = vunpack.c.l.b16 %v736
        %v750 = vunpack.c.l.b16 %v737
        %v751 = vpack.c.b16 %v750, %v749
        %vm752 = vcmask 162816
        %v754 = vsel %vm752, %v751, 0
        %vm756 = vcmask 1041408
        %v758 = vsel %vm756, %v734, 0
        %v761 = vsel %vm756, %v735, 0
        %763 = vmatprep.subr.bf16.mxu0 0
        %764 = vmatpush1.bf16.msra.mxu0 0
        %765 = vmatprep.subr.bf16.mxu0 0
        %766 = vmatpush1.bf16.msra.mxu0 0
        %767 = vmatprep.subr.bf16.mxu0 0
        %768 = vmatpush1.bf16.msra.mxu0 0
        %769 = vmatprep.subr.bf16.mxu0 0
        %770 = vmatpush1.bf16.msra.mxu0 0
        %771 = vmatprep.subr.bf16.mxu0 0
        %772 = vmatpush1.bf16.msra.mxu0 0
        %773 = vmatprep.subr.bf16.mxu0 0
        %774 = vmatpush1.bf16.msra.mxu0 0
        %775 = vmatprep.subr.bf16.mxu0 %v761
        %776 = vmatpush1.bf16.msra.mxu0 %v758
        %777 = vmatprep.subr.bf16.mxu0 %v733
        %778 = vmatpush1.bf16.msra.mxu0 %v732
        %779 = vmatprep.subr.bf16.mxu0 0
        %780 = vmatpush2.bf16.msra.mxu0 0
        %781 = vmatprep.subr.bf16.mxu0 0
        %782 = vmatpush2.bf16.msra.mxu0 0
        %783 = vmatprep.subr.bf16.mxu0 0
        %784 = vmatpush2.bf16.msra.mxu0 0
        %785 = vmatprep.subr.bf16.mxu0 0
        %786 = vmatpush2.bf16.msra.mxu0 0
        %787 = vmatprep.subr.bf16.mxu0 0
        %788 = vmatpush2.bf16.msra.mxu0 0
        %789 = vmatprep.subr.bf16.mxu0 0
        %790 = vmatpush2.bf16.msra.mxu0 0
        %791 = vmatprep.subr.bf16.mxu0 0
        %792 = vmatpush2.bf16.msra.mxu0 0
        %793 = vmatprep.subr.bf16.mxu0 0
        %794 = vmatpush2.bf16.msra.mxu0 0
        %795 = vmatprep.mubr.bf16.mxu0 0
        %796 = vmatmul.mubr.bf16.gmra.mxu0 %v754
        %v797 = vpop.f32.mrf.mxu0
        %v798 = vadd.f32 %v740, %v797
        %v799 = vpop.f32.mrf.mxu0
        %v800 = vadd.f32 %v740, %v799
        %v801 = vpop.f32.mrf.mxu0
        %v802 = vadd.f32 %v745, %v801
        %v803 = vpop.f32.mrf.mxu0
        %v804 = vadd.f32 %v745, %v803
        %805 = vdwg.mxu0
        %v806 = vtanh.pop %v798
        %v807 = vtanh.pop %v800
        %v808 = vtanh.pop %v802
        %v809 = vtanh.pop %v804
        %810 = vset.pattern.permute.xlu0 2
        %811 = vperm.xlu0 %810, %v628
        %v812 = vpop.permute.xlu0 %811
        %814 = vset.pattern.permute.xlu0 2
        %815 = vperm.xlu0 %814, %v631
        %v816 = vpop.permute.xlu0 %815
        %v818 = vmul.f32 %v806, %v812
        %v819 = vmul.f32 %v807, %v812
        %v820 = vmul.f32 %v808, %v816
        %v821 = vmul.f32 %v809, %v816
        %822 = vset.pattern.permute.xlu0 3
        %823 = vperm.xlu0 %822, %v628
        %v824 = vpop.permute.xlu0 %823
        %826 = vset.pattern.permute.xlu0 3
        %827 = vperm.xlu0 %826, %v631
        %v828 = vpop.permute.xlu0 %827
        %v830 = vadd.f32 %v818, %v824
        %v831 = vadd.f32 %v819, %v824
        %v832 = vadd.f32 %v820, %v828
        %v833 = vadd.f32 %v821, %v828
        %v834 = vtanh.pop %v830
        %v835 = vtanh.pop %v831
        %v836 = vtanh.pop %v832
        %v837 = vtanh.pop %v833
        %v842 = vunpack.c.l.b16 %v732
        %v843 = vunpack.c.l.b16 %v733
        %v844 = vunpack.c.h.b16 %v732
        %v845 = vunpack.c.h.b16 %v733
        %v846 = vunpack.c.l.b16 %v734
        %v847 = vunpack.c.l.b16 %v735
        %v848 = vpack.c.b16 %v843, %v842
        %v849 = vpack.c.b16 %v845, %v844
        %v850 = vpack.c.b16 %v847, %v846
        %854 = vst [vmem:[%s614] sm:$0xff] %v848
        %855 = vst [vmem:[%s614 + $0x8] sm:$0xff] %v849
        %856 = vst [vmem:[%s614 + $0x10] sm:$0x33] %v850
        %v857 = vpack.c.bf16 %v808, %v806
        %v858 = vpack.c.bf16 %v809, %v807
        %v861 = vunpack.c.l.b16 %v857
        %v862 = vunpack.c.l.b16 %v858
        %v863 = vunpack.c.h.b16 %v857
        %v864 = vunpack.c.h.b16 %v858
        %v865 = vpack.c.b16 %v862, %v861
        %v866 = vpack.c.b16 %v864, %v863
        %vm867 = vcmask 1041408
        %vm868 = vcmask 1045508
        %vm869 = vmor %vm867, %vm868
        %v870 = vrot.slane %v865, 6
        %v871 = vrot.slane %v870, 4
        %v872 = vrot.slane %v866, 6
        %v873 = vsel %vm869, %v871, %v872
        %876 = vst [vmem:[%s614 + $0x10] sm:$0xcc] %v870
        %877 = vst [vmem:[%s614 + $0x18] sm:$0x77] %v873
        %v878 = vpack.c.bf16 %v836, %v834
        %v879 = vpack.c.bf16 %v837, %v835
        %v882 = vunpack.c.l.b16 %v878
        %v883 = vunpack.c.l.b16 %v879
        %v884 = vunpack.c.h.b16 %v878
        %v885 = vunpack.c.h.b16 %v879
        %v886 = vpack.c.b16 %v883, %v882
        %v887 = vpack.c.b16 %v885, %v884
        %vm888 = vcmask 1042432
        %vm889 = vcmask 1046532
        %vm890 = vmor %vm888, %vm889
        %v891 = vrot.slane %v886, 5
        %v892 = vrot.slane %v891, 4
        %v893 = vrot.slane %v887, 5
        %v894 = vsel %vm890, %v892, %v893
        %897 = vst [vmem:[%s614 + $0x18] sm:$0x88] %v891
        %898 = vst [vmem:[%s614 + $0x20] sm:$0xff] %v894
        %s899 = sand.u32 %s115, 1
        %s900 = scalar_lea.sflag [#allocation4], %s899
        %s901 = sand.u32 %s115, 1
        %s902 = smul.addr %s901, 40
        %s903 = scalar_lea.vmem [#allocation3], %s902
        // Predicated region
        $region103: #{tpu_custom_call.1} parent=97 // pred_check
          %p904 = pneg %p125
        $region104: #{tpu_custom_call.1} parent=97 // pred_check_branch
          %906 = sbr.rel (%p904) target = $region106
        $region105: #{tpu_custom_call.1} parent=97 // pred_region
          %s907 = smul.u32 2, %s18
          %s908 = ssub.s32 3, %s907
          %p909 = scmp.lt.s32.totalorder %s908, 2
          %s910 = scalar_select %p909, %s908, 2
          %s911 = smul.u32 320, %s910
          %s913 = ssub.s32 640, %s911
          %914 = vsyncadd %s900, %s913
          %p915 = scmp.ne.s32.totalorder 0, %s911
          %s916 = smul.addr %s907, 64
          %s917 = scalar_lea.hbm %s4, %s916
          %s918 = smul.u32 %s910, 4
          %s919 = smul.u32 %s918, 5
          %s920 = sshll.u32 %s903, 4
          %s921 = int_to_ptr.vmem [resolvable:$true] %s920
          %s922 = sshll.u32 %s919, 4
          %926 = dma.vmem_to_hbm [thread:$0]  (%p915), %s921, %s922, %s917, %s900, 128, 192, %s918
        $region106: #{tpu_custom_call.1} parent=97 // pred_fallthru
          _
      $region98: #{tpu_custom_call.1} parent=5 // pred_fallthru
        _
      %p927 = scmp.le.s32.totalorder 2, %s13
      // Predicated region
      $region107: #{tpu_custom_call.1} parent=5 // pred_check
        %p928 = pneg %p927
      $region108: #{tpu_custom_call.1} parent=5 // pred_check_branch
        %930 = sbr.rel (%p928) target = $region110
      $region109: #{tpu_custom_call.1} parent=5 // pred_region
        %s931 = ssub.s32 %s13, 2
        // Predicated region
        $region111: #{tpu_custom_call.1} parent=109 // pred_check
          %p932 = pneg %p131
        $region112: #{tpu_custom_call.1} parent=109 // pred_check_branch
          %934 = sbr.rel (%p932) target = $region114
        $region113: #{tpu_custom_call.1} parent=109 // pred_region
          %s935 = sand.u32 %s116, 1
          %s936 = scalar_lea.sflag [#allocation4], %s935
          %s937 = sand.u32 %s116, 1
          %s938 = smul.addr %s937, 40
          %s939 = scalar_lea.vmem [#allocation3], %s938
          %940 = dma.done %s936, 640
        $region114: #{tpu_custom_call.1} parent=109 // pred_fallthru
          _
      $region110: #{tpu_custom_call.1} parent=5 // pred_fallthru
        _
    $region6: #{tpu_custom_call.1} parent=1 // loop_footer
      %s17 = sadd.s32 1, %s13
    $region7: #{tpu_custom_call.1} parent=1 // loop_footer_branch
      %12 = sbr.rel target = $region3
    $region8: #{tpu_custom_call.1} parent=1 // loop_exit
      _
    %941 = vsyncpa [#allocation4], 1
    %s942 = scalar_lea.sflag [#allocation4], 1
    %943 = vsyncpa %s942, 1

</llo_original>
